<compile_context>
chip_gen: v7x
topology: tpu7x:2x2x1
jax: 0.10.0
libtpu: 0.0.40
codegen_flags: <defaults>
</compile_context>

<pallas_src>
import functools

import jax
import jax.numpy as jnp
from jax.experimental import pallas as pl
from jax.experimental.pallas import tpu as pltpu


def quality_kernel(patches_ref, w_ref, shift_ref, fcw_ref, fcb_ref, out_ref):
    # patches_ref: (M, K) bf16          w_ref:  (K, Cout) bf16  (BN scale folded in)
    # shift_ref:   (1, Cout) f32        fcw_ref:(1, Cout) f32
    # fcb_ref:     (1, 1) f32 in SMEM   out_ref:(N, 1) f32
    M = patches_ref.shape[0]
    Cout = w_ref.shape[1]
    N = out_ref.shape[0]
    P = M // N

    y = jnp.dot(patches_ref[...], w_ref[...],
                preferred_element_type=jnp.float32)           # conv as one bf16 MXU matmul
    y = jnp.maximum(y + shift_ref[...], 0.0)                  # BN shift + ReLU (VPU)

    # global average pool: per-image mean over the P patch rows (sublane/XLU reduce,
    # replaces the old (N, N*P) f32 pooling matmul)
    pooled = jnp.mean(y.reshape(N, P, Cout), axis=1)          # (N, Cout)

    z = pooled * fcw_ref[...]                                 # FC weight as VPU multiply
    out = jnp.sum(z, axis=-1, keepdims=True) + fcb_ref[0, 0]  # lane reduce + bias -> (N, 1)
    out_ref[...] = out.astype(out_ref.dtype)


@functools.partial(jax.jit, static_argnames=("eps",))
def quality_part_forward(x_nchw, conv_w, bn_gamma, bn_beta, bn_mean, bn_var,
                         fc_w, fc_b, eps=1e-5):
    N, Cin, H, W = x_nchw.shape
    Cout = conv_w.shape[0]
    Ho = (H + 2 * 1 - 3) // 2 + 1
    Wo = (W + 2 * 1 - 3) // 2 + 1
    P, K = Ho * Wo, 9 * Cin
    M = N * P

    # ---- glue (fused under jit): layout conversion + im2col (pure data movement) ----
    x = jnp.transpose(x_nchw, (0, 2, 3, 1))                   # NHWC
    xp = jnp.pad(x, ((0, 0), (1, 1), (1, 1), (0, 0)))         # zero pad (padding=1)
    cols = []
    for ky in range(3):
        for kx in range(3):
            cols.append(xp[:, ky:ky + 2 * Ho:2, kx:kx + 2 * Wo:2, :])   # (N, Ho, Wo, Cin)
    patches = jnp.stack(cols, axis=3).reshape(M, K).astype(jnp.bfloat16)

    # fold BatchNorm (inference) scale into the conv weight columns
    scale = bn_gamma / jnp.sqrt(bn_var + eps)                            # (Cout,)
    wmat = (jnp.transpose(conv_w, (2, 3, 1, 0)).reshape(K, Cout)
            * scale[None, :]).astype(jnp.bfloat16)                       # (K, Cout) bf16
    shift = (bn_beta - bn_mean * scale).reshape(1, Cout).astype(jnp.float32)

    fcw = fc_w.reshape(1, Cout).astype(jnp.float32)
    fcb = fc_b.reshape(1, 1).astype(jnp.float32)

    out = pl.pallas_call(
        quality_kernel,
        out_shape=jax.ShapeDtypeStruct((N, 1), jnp.float32),
        in_specs=[
            pl.BlockSpec(memory_space=pltpu.MemorySpace.VMEM),   # patches
            pl.BlockSpec(memory_space=pltpu.MemorySpace.VMEM),   # wmat (BN-scaled)
            pl.BlockSpec(memory_space=pltpu.MemorySpace.VMEM),   # shift
            pl.BlockSpec(memory_space=pltpu.MemorySpace.VMEM),   # fc weight row
            pl.BlockSpec(memory_space=pltpu.MemorySpace.SMEM),   # fc bias scalar
        ],
        out_specs=pl.BlockSpec(memory_space=pltpu.MemorySpace.VMEM),
    )(patches, wmat, shift, fcw, fcb)
    return out


def reference_forward(x_nchw, conv_w, bn_gamma, bn_beta, bn_mean, bn_var, fc_w, fc_b, eps=1e-5):
    y = jax.lax.conv_general_dilated(
        x_nchw, conv_w, window_strides=(2, 2), padding=((1, 1), (1, 1)),
        dimension_numbers=("NCHW", "OIHW", "NCHW"))
    scale = bn_gamma / jnp.sqrt(bn_var + eps)
    shift = bn_beta - bn_mean * scale
    y = y * scale[None, :, None, None] + shift[None, :, None, None]
    y = jnp.maximum(y, 0.0)
    y = jnp.mean(y, axis=(2, 3))                               # global avg pool -> (N, Cout)
    return y @ fc_w.T + fc_b[None, :]


if __name__ == "__main__":
    # small shapes consistent with the module (inplanes/planes scaled down, lane-aligned)
    N, Cin, H, W = 2, 128, 8, 8
    Cout = 256

    key = jax.random.PRNGKey(0)
    kx, kw, kfw, kfb = jax.random.split(key, 4)

    x = jax.random.normal(kx, (N, Cin, H, W), dtype=jnp.float32)

    # Conv2d: kaiming_normal_(mode='fan_out', nonlinearity='relu'), no bias
    fan_out = Cout * 3 * 3
    conv_w = jax.random.normal(kw, (Cout, Cin, 3, 3), dtype=jnp.float32) * jnp.sqrt(2.0 / fan_out)

    # BatchNorm2d: weight=1, bias=0, running stats of a fresh module
    bn_gamma = jnp.ones((Cout,), jnp.float32)
    bn_beta = jnp.zeros((Cout,), jnp.float32)
    bn_mean = jnp.zeros((Cout,), jnp.float32)
    bn_var = jnp.ones((Cout,), jnp.float32)

    # Linear(planes, 1): default PyTorch uniform init
    bound = 1.0 / jnp.sqrt(Cout)
    fc_w = jax.random.uniform(kfw, (1, Cout), jnp.float32, -bound, bound)
    fc_b = jax.random.uniform(kfb, (1,), jnp.float32, -bound, bound)

    out = quality_part_forward(x, conv_w, bn_gamma, bn_beta, bn_mean, bn_var, fc_w, fc_b)
    out = jax.block_until_ready(out)

    ref = jax.block_until_ready(
        reference_forward(x, conv_w, bn_gamma, bn_beta, bn_mean, bn_var, fc_w, fc_b))

    assert out.shape == (N, 1), out.shape
    # bf16 conv operands (f32 accumulation) -> slightly relaxed tolerance vs pure-f32 reference
    assert jnp.allclose(out, ref, rtol=1e-2, atol=1e-2), (out, ref)
    print("KERNEL_OK")
</pallas_src>

<mosaic_0001>
module attributes {stable_mosaic.version = 11 : i64} {
  func.func @quality_kernel(%arg0: memref<32x1152xbf16, #tpu.memory_space<vmem>>, %arg1: memref<1152x256xbf16, #tpu.memory_space<vmem>>, %arg2: memref<1x256xf32, #tpu.memory_space<vmem>>, %arg3: memref<1x256xf32, #tpu.memory_space<vmem>>, %arg4: memref<1x1xf32, #tpu.memory_space<smem>>, %arg5: memref<2x1xf32, #tpu.memory_space<vmem>>) attributes {dimension_semantics = [], scalar_prefetch = 0 : i64, scratch_operands = 0 : i64, tpu.core_type = #tpu.core_type<tc>} {
    %c0 = arith.constant 0 : index
    %c0_0 = arith.constant 0 : index
    %0 = vector.load %arg0[%c0, %c0_0] : memref<32x1152xbf16, #tpu.memory_space<vmem>>, vector<32x1152xbf16>
    %c0_1 = arith.constant 0 : index
    %c0_2 = arith.constant 0 : index
    %1 = vector.load %arg1[%c0_1, %c0_2] : memref<1152x256xbf16, #tpu.memory_space<vmem>>, vector<1152x256xbf16>
    %cst = arith.constant dense<0.000000e+00> : vector<32x256xf32>
    %2 = tpu.matmul %0, %1, %cst {dimension_numbers = #tpu.dot_dimension_numbers<[1], [0], [0], [1], [0, 0, 1, 1], [], []>} : vector<32x1152xbf16>, vector<1152x256xbf16>, vector<32x256xf32> -> vector<32x256xf32>
    %c0_3 = arith.constant 0 : index
    %c0_4 = arith.constant 0 : index
    %3 = vector.load %arg2[%c0_3, %c0_4] : memref<1x256xf32, #tpu.memory_space<vmem>>, vector<1x256xf32>
    %4 = vector.broadcast %3 : vector<1x256xf32> to vector<32x256xf32>
    %5 = arith.addf %2, %4 : vector<32x256xf32>
    %cst_5 = arith.constant 0.000000e+00 : f32
    %6 = vector.broadcast %cst_5 : f32 to vector<32x256xf32>
    %7 = arith.maximumf %5, %6 : vector<32x256xf32>
    %8 = vector.shape_cast %7 : vector<32x256xf32> to vector<2x16x256xf32>
    %cst_6 = arith.constant dense<0.000000e+00> : vector<2x256xf32>
    %9 = vector.multi_reduction <add>, %8, %cst_6 [1] : vector<2x16x256xf32> to vector<2x256xf32>
    %cst_7 = arith.constant 1.600000e+01 : f32
    %10 = vector.broadcast %cst_7 : f32 to vector<2x256xf32>
    %11 = arith.divf %9, %10 : vector<2x256xf32>
    %c0_8 = arith.constant 0 : index
    %c0_9 = arith.constant 0 : index
    %12 = vector.load %arg3[%c0_8, %c0_9] : memref<1x256xf32, #tpu.memory_space<vmem>>, vector<1x256xf32>
    %13 = vector.broadcast %12 : vector<1x256xf32> to vector<2x256xf32>
    %14 = arith.mulf %11, %13 : vector<2x256xf32>
    %cst_10 = arith.constant dense<0.000000e+00> : vector<2xf32>
    %15 = vector.multi_reduction <add>, %14, %cst_10 [1] : vector<2x256xf32> to vector<2xf32>
    %16 = vector.shape_cast %15 : vector<2xf32> to vector<2x1xf32>
    %c0_11 = arith.constant 0 : index
    %c0_12 = arith.constant 0 : index
    %17 = memref.load %arg4[%c0_11, %c0_12] : memref<1x1xf32, #tpu.memory_space<smem>>
    %18 = vector.broadcast %17 : f32 to vector<2x1xf32>
    %19 = arith.addf %16, %18 : vector<2x1xf32>
    %c0_13 = arith.constant 0 : index
    %c0_14 = arith.constant 0 : index
    %20 = vector.load %arg5[%c0_13, %c0_14] : memref<2x1xf32, #tpu.memory_space<vmem>>, vector<2x1xf32>
    tpu.vector_store %arg5[%c0_13, %c0_14], %19 {strides = array<i32>} : memref<2x1xf32, #tpu.memory_space<vmem>>, vector<2x1xf32>,
    return
  }
}

</mosaic_0001>

<llo_original>
// kernel: quality_part_forward.1
$region0: #{quality_part_forward.1}
  #allocation0 [shape = 'u32[]', space=smem, size = 0x4, offset = 0x4, fixed_abs, tag = 'smem constant byte address 0x4 - core index']
  #allocation1 [shape = 'u32[144,128]{1,0:T(1,128)}', space=vmem, size = 0x12000, scoped, tag = 'internal scratch']
  #allocation2 [shape = 'f32[1,1]{1,0:T(1,128)S(6)}', space=smem, size = 0x200, scoped, tag = 'scoped memory for quality_part_forward.1']
  %s0 = inlined_call_operand.vmem [shape: bf16[32,1152], index: 0, kind: input, shape index: {}]
  %s1 = inlined_call_operand.vmem [shape: bf16[1152,256], index: 1, kind: input, shape index: {}]
  %s2 = inlined_call_operand.vmem [shape: f32[1,256], index: 2, kind: input, shape index: {}]
  %s3 = inlined_call_operand.vmem [shape: f32[1,256], index: 3, kind: input, shape index: {}]
  %s4 = inlined_call_operand.<no memory space> [shape: f32[1,1], index: 4, kind: input, shape index: {}]
  %s5 = inlined_call_operand.vmem [shape: f32[2,1], index: 5, kind: output, shape index: {}]
  %s6 = sld [smem:[#allocation0]]
  $region30: #{quality_part_forward.1} parent=0
    _
  %s8 = ssub.s32 1, %s6
  %s9 = scalar_select 0, %s8, %s6
  %10 = sst [smem:[#allocation2]] %s4
  // Predicated region
  $region2: #{quality_part_forward.1} parent=0 // pred_check
    _
  $region3: #{quality_part_forward.1} parent=0 // pred_check_branch
    %12 = sbr.rel (0) target = $region5
  $region4: #{quality_part_forward.1} parent=0 // pred_region
    _
  $region5: #{quality_part_forward.1} parent=0 // pred_fallthru
    _
  // Predicated region
  $region6: #{quality_part_forward.1} parent=0 // pred_check
    _
  $region7: #{quality_part_forward.1} parent=0 // pred_check_branch
    %14 = sbr.rel (0) target = $region9
  $region8: #{quality_part_forward.1} parent=0 // pred_region
    _
  $region9: #{quality_part_forward.1} parent=0 // pred_fallthru
    _
  // Predicated region
  $region10: #{quality_part_forward.1} parent=0 // pred_check
    _
  $region11: #{quality_part_forward.1} parent=0 // pred_check_branch
    %16 = sbr.rel (0) target = $region13
  $region12: #{quality_part_forward.1} parent=0 // pred_region
    _
  $region13: #{quality_part_forward.1} parent=0 // pred_fallthru
    _
  // Predicated region
  $region14: #{quality_part_forward.1} parent=0 // pred_check
    _
  $region15: #{quality_part_forward.1} parent=0 // pred_check_branch
    %18 = sbr.rel (0) target = $region17
  $region16: #{quality_part_forward.1} parent=0 // pred_region
    _
  $region17: #{quality_part_forward.1} parent=0 // pred_fallthru
    _
  // Predicated region
  $region18: #{quality_part_forward.1} parent=0 // pred_check
    _
  $region19: #{quality_part_forward.1} parent=0 // pred_check_branch
    %20 = sbr.rel (0) target = $region21
  $region20: #{quality_part_forward.1} parent=0 // pred_region
    _
  $region21: #{quality_part_forward.1} parent=0 // pred_fallthru
    _
  %v22 = vld [vmem:[%s0] sm:$0xff]
  %v23 = vld [vmem:[%s0 + $0x8] sm:$0xff]
  %v24 = vld [vmem:[%s0 + $0x10] sm:$0xff]
  %v25 = vld [vmem:[%s0 + $0x18] sm:$0xff]
  %v26 = vld [vmem:[%s0 + $0x20] sm:$0xf]
  %v27 = vld [vmem:[%s0 + $0x24] sm:$0xff]
  %v28 = vld [vmem:[%s0 + $0x2c] sm:$0xff]
  %v29 = vld [vmem:[%s0 + $0x34] sm:$0xff]
  %v30 = vld [vmem:[%s0 + $0x3c] sm:$0xff]
  %v31 = vld [vmem:[%s0 + $0x44] sm:$0xf]
  %v32 = vld [vmem:[%s0 + $0x48] sm:$0xff]
  %v33 = vld [vmem:[%s0 + $0x50] sm:$0xff]
  %v34 = vld [vmem:[%s0 + $0x58] sm:$0xff]
  %v35 = vld [vmem:[%s0 + $0x60] sm:$0xff]
  %v36 = vld [vmem:[%s0 + $0x68] sm:$0xf]
  %v37 = vld [vmem:[%s0 + $0x6c] sm:$0xff]
  %v38 = vld [vmem:[%s0 + $0x74] sm:$0xff]
  %v39 = vld [vmem:[%s0 + $0x7c] sm:$0xff]
  %v40 = vld [vmem:[%s0 + $0x84] sm:$0xff]
  %v41 = vld [vmem:[%s0 + $0x8c] sm:$0xf]
  %v42 = vld [vmem:[%s1] sm:$0xff]
  %v43 = vld [vmem:[%s1 + $0x8] sm:$0xff]
  %v44 = vld [vmem:[%s1 + $0x10] sm:$0xff]
  %v45 = vld [vmem:[%s1 + $0x18] sm:$0xff]
  %v46 = vld [vmem:[%s1 + $0x20] sm:$0xff]
  %v47 = vld [vmem:[%s1 + $0x28] sm:$0xff]
  %v48 = vld [vmem:[%s1 + $0x30] sm:$0xff]
  %v49 = vld [vmem:[%s1 + $0x38] sm:$0xff]
  %v50 = vld [vmem:[%s1 + $0x40] sm:$0xff]
  %v51 = vld [vmem:[%s1 + $0x48] sm:$0xff]
  %v52 = vld [vmem:[%s1 + $0x50] sm:$0xff]
  %v53 = vld [vmem:[%s1 + $0x58] sm:$0xff]
  %v54 = vld [vmem:[%s1 + $0x60] sm:$0xff]
  %v55 = vld [vmem:[%s1 + $0x68] sm:$0xff]
  %v56 = vld [vmem:[%s1 + $0x70] sm:$0xff]
  %v57 = vld [vmem:[%s1 + $0x78] sm:$0xff]
  %v58 = vld [vmem:[%s1 + $0x80] sm:$0xff]
  %v59 = vld [vmem:[%s1 + $0x88] sm:$0xff]
  %v60 = vld [vmem:[%s1 + $0x90] sm:$0xff]
  %v61 = vld [vmem:[%s1 + $0x98] sm:$0xff]
  %v62 = vld [vmem:[%s1 + $0xa0] sm:$0xff]
  %v63 = vld [vmem:[%s1 + $0xa8] sm:$0xff]
  %v64 = vld [vmem:[%s1 + $0xb0] sm:$0xff]
  %v65 = vld [vmem:[%s1 + $0xb8] sm:$0xff]
  %v66 = vld [vmem:[%s1 + $0xc0] sm:$0xff]
  %v67 = vld [vmem:[%s1 + $0xc8] sm:$0xff]
  %v68 = vld [vmem:[%s1 + $0xd0] sm:$0xff]
  %v69 = vld [vmem:[%s1 + $0xd8] sm:$0xff]
  %v70 = vld [vmem:[%s1 + $0xe0] sm:$0xff]
  %v71 = vld [vmem:[%s1 + $0xe8] sm:$0xff]
  %v72 = vld [vmem:[%s1 + $0xf0] sm:$0xff]
  %v73 = vld [vmem:[%s1 + $0xf8] sm:$0xff]
  %v74 = vld [vmem:[%s1 + $0x100] sm:$0xff]
  %v75 = vld [vmem:[%s1 + $0x108] sm:$0xff]
  %v76 = vld [vmem:[%s1 + $0x110] sm:$0xff]
  %v77 = vld [vmem:[%s1 + $0x118] sm:$0xff]
  %v78 = vld [vmem:[%s1 + $0x120] sm:$0xff]
  %v79 = vld [vmem:[%s1 + $0x128] sm:$0xff]
  %v80 = vld [vmem:[%s1 + $0x130] sm:$0xff]
  %v81 = vld [vmem:[%s1 + $0x138] sm:$0xff]
  %v82 = vld [vmem:[%s1 + $0x140] sm:$0xff]
  %v83 = vld [vmem:[%s1 + $0x148] sm:$0xff]
  %v84 = vld [vmem:[%s1 + $0x150] sm:$0xff]
  %v85 = vld [vmem:[%s1 + $0x158] sm:$0xff]
  %v86 = vld [vmem:[%s1 + $0x160] sm:$0xff]
  %v87 = vld [vmem:[%s1 + $0x168] sm:$0xff]
  %v88 = vld [vmem:[%s1 + $0x170] sm:$0xff]
  %v89 = vld [vmem:[%s1 + $0x178] sm:$0xff]
  %v90 = vld [vmem:[%s1 + $0x180] sm:$0xff]
  %v91 = vld [vmem:[%s1 + $0x188] sm:$0xff]
  %v92 = vld [vmem:[%s1 + $0x190] sm:$0xff]
  %v93 = vld [vmem:[%s1 + $0x198] sm:$0xff]
  %v94 = vld [vmem:[%s1 + $0x1a0] sm:$0xff]
  %v95 = vld [vmem:[%s1 + $0x1a8] sm:$0xff]
  %v96 = vld [vmem:[%s1 + $0x1b0] sm:$0xff]
  %v97 = vld [vmem:[%s1 + $0x1b8] sm:$0xff]
  %v98 = vld [vmem:[%s1 + $0x1c0] sm:$0xff]
  %v99 = vld [vmem:[%s1 + $0x1c8] sm:$0xff]
  %v100 = vld [vmem:[%s1 + $0x1d0] sm:$0xff]
  %v101 = vld [vmem:[%s1 + $0x1d8] sm:$0xff]
  %v102 = vld [vmem:[%s1 + $0x1e0] sm:$0xff]
  %v103 = vld [vmem:[%s1 + $0x1e8] sm:$0xff]
  %v104 = vld [vmem:[%s1 + $0x1f0] sm:$0xff]
  %v105 = vld [vmem:[%s1 + $0x1f8] sm:$0xff]
  %v106 = vld [vmem:[%s1 + $0x200] sm:$0xff]
  %v107 = vld [vmem:[%s1 + $0x208] sm:$0xff]
  %v108 = vld [vmem:[%s1 + $0x210] sm:$0xff]
  %v109 = vld [vmem:[%s1 + $0x218] sm:$0xff]
  %v110 = vld [vmem:[%s1 + $0x220] sm:$0xff]
  %v111 = vld [vmem:[%s1 + $0x228] sm:$0xff]
  %v112 = vld [vmem:[%s1 + $0x230] sm:$0xff]
  %v113 = vld [vmem:[%s1 + $0x238] sm:$0xff]
  %v114 = vld [vmem:[%s1 + $0x240] sm:$0xff]
  %v115 = vld [vmem:[%s1 + $0x248] sm:$0xff]
  %v116 = vld [vmem:[%s1 + $0x250] sm:$0xff]
  %v117 = vld [vmem:[%s1 + $0x258] sm:$0xff]
  %v118 = vld [vmem:[%s1 + $0x260] sm:$0xff]
  %v119 = vld [vmem:[%s1 + $0x268] sm:$0xff]
  %v120 = vld [vmem:[%s1 + $0x270] sm:$0xff]
  %v121 = vld [vmem:[%s1 + $0x278] sm:$0xff]
  %v122 = vld [vmem:[%s1 + $0x280] sm:$0xff]
  %v123 = vld [vmem:[%s1 + $0x288] sm:$0xff]
  %v124 = vld [vmem:[%s1 + $0x290] sm:$0xff]
  %v125 = vld [vmem:[%s1 + $0x298] sm:$0xff]
  %v126 = vld [vmem:[%s1 + $0x2a0] sm:$0xff]
  %v127 = vld [vmem:[%s1 + $0x2a8] sm:$0xff]
  %v128 = vld [vmem:[%s1 + $0x2b0] sm:$0xff]
  %v129 = vld [vmem:[%s1 + $0x2b8] sm:$0xff]
  %v130 = vld [vmem:[%s1 + $0x2c0] sm:$0xff]
  %v131 = vld [vmem:[%s1 + $0x2c8] sm:$0xff]
  %v132 = vld [vmem:[%s1 + $0x2d0] sm:$0xff]
  %v133 = vld [vmem:[%s1 + $0x2d8] sm:$0xff]
  %v134 = vld [vmem:[%s1 + $0x2e0] sm:$0xff]
  %v135 = vld [vmem:[%s1 + $0x2e8] sm:$0xff]
  %v136 = vld [vmem:[%s1 + $0x2f0] sm:$0xff]
  %v137 = vld [vmem:[%s1 + $0x2f8] sm:$0xff]
  %v138 = vld [vmem:[%s1 + $0x300] sm:$0xff]
  %v139 = vld [vmem:[%s1 + $0x308] sm:$0xff]
  %v140 = vld [vmem:[%s1 + $0x310] sm:$0xff]
  %v141 = vld [vmem:[%s1 + $0x318] sm:$0xff]
  %v142 = vld [vmem:[%s1 + $0x320] sm:$0xff]
  %v143 = vld [vmem:[%s1 + $0x328] sm:$0xff]
  %v144 = vld [vmem:[%s1 + $0x330] sm:$0xff]
  %v145 = vld [vmem:[%s1 + $0x338] sm:$0xff]
  %v146 = vld [vmem:[%s1 + $0x340] sm:$0xff]
  %v147 = vld [vmem:[%s1 + $0x348] sm:$0xff]
  %v148 = vld [vmem:[%s1 + $0x350] sm:$0xff]
  %v149 = vld [vmem:[%s1 + $0x358] sm:$0xff]
  %v150 = vld [vmem:[%s1 + $0x360] sm:$0xff]
  %v151 = vld [vmem:[%s1 + $0x368] sm:$0xff]
  %v152 = vld [vmem:[%s1 + $0x370] sm:$0xff]
  %v153 = vld [vmem:[%s1 + $0x378] sm:$0xff]
  %v154 = vld [vmem:[%s1 + $0x380] sm:$0xff]
  %v155 = vld [vmem:[%s1 + $0x388] sm:$0xff]
  %v156 = vld [vmem:[%s1 + $0x390] sm:$0xff]
  %v157 = vld [vmem:[%s1 + $0x398] sm:$0xff]
  %v158 = vld [vmem:[%s1 + $0x3a0] sm:$0xff]
  %v159 = vld [vmem:[%s1 + $0x3a8] sm:$0xff]
  %v160 = vld [vmem:[%s1 + $0x3b0] sm:$0xff]
  %v161 = vld [vmem:[%s1 + $0x3b8] sm:$0xff]
  %v162 = vld [vmem:[%s1 + $0x3c0] sm:$0xff]
  %v163 = vld [vmem:[%s1 + $0x3c8] sm:$0xff]
  %v164 = vld [vmem:[%s1 + $0x3d0] sm:$0xff]
  %v165 = vld [vmem:[%s1 + $0x3d8] sm:$0xff]
  %v166 = vld [vmem:[%s1 + $0x3e0] sm:$0xff]
  %v167 = vld [vmem:[%s1 + $0x3e8] sm:$0xff]
  %v168 = vld [vmem:[%s1 + $0x3f0] sm:$0xff]
  %v169 = vld [vmem:[%s1 + $0x3f8] sm:$0xff]
  %v170 = vld [vmem:[%s1 + $0x400] sm:$0xff]
  %v171 = vld [vmem:[%s1 + $0x408] sm:$0xff]
  %v172 = vld [vmem:[%s1 + $0x410] sm:$0xff]
  %v173 = vld [vmem:[%s1 + $0x418] sm:$0xff]
  %v174 = vld [vmem:[%s1 + $0x420] sm:$0xff]
  %v175 = vld [vmem:[%s1 + $0x428] sm:$0xff]
  %v176 = vld [vmem:[%s1 + $0x430] sm:$0xff]
  %v177 = vld [vmem:[%s1 + $0x438] sm:$0xff]
  %v178 = vld [vmem:[%s1 + $0x440] sm:$0xff]
  %v179 = vld [vmem:[%s1 + $0x448] sm:$0xff]
  %v180 = vld [vmem:[%s1 + $0x450] sm:$0xff]
  %v181 = vld [vmem:[%s1 + $0x458] sm:$0xff]
  %v182 = vld [vmem:[%s1 + $0x460] sm:$0xff]
  %v183 = vld [vmem:[%s1 + $0x468] sm:$0xff]
  %v184 = vld [vmem:[%s1 + $0x470] sm:$0xff]
  %v185 = vld [vmem:[%s1 + $0x478] sm:$0xff]
  %v186 = vld [vmem:[%s2] sm:$0x3]
  %v188 = vlaneseq
  %v189 = vshrl.u32 %v188, 7
  %v190 = vsub.s32 0, %v189
  %v191 = vrot.slane %v186, %v190
  %v192 = vlaneseq
  %v193 = vshrl.u32 %v192, 7
  %v194 = vsub.s32 1, %v193
  %v195 = vrot.slane %v186, %v194
  %v218 = vunpack.c.l.b16 %v22
  %v219 = vunpack.c.h.b16 %v22
  %v220 = vunpack.c.l.b16 %v23
  %v221 = vunpack.c.h.b16 %v23
  %v222 = vunpack.c.l.b16 %v24
  %v223 = vunpack.c.h.b16 %v24
  %v224 = vunpack.c.l.b16 %v25
  %v225 = vunpack.c.h.b16 %v25
  %v226 = vunpack.c.l.b16 %v26
  %v227 = vunpack.c.l.b16 %v27
  %v228 = vunpack.c.h.b16 %v27
  %v229 = vunpack.c.l.b16 %v28
  %v230 = vunpack.c.h.b16 %v28
  %v231 = vunpack.c.l.b16 %v29
  %v232 = vunpack.c.h.b16 %v29
  %v233 = vunpack.c.l.b16 %v30
  %v234 = vunpack.c.h.b16 %v30
  %v235 = vunpack.c.l.b16 %v31
  %v236 = vunpack.c.l.b16 %v32
  %v237 = vunpack.c.h.b16 %v32
  %v238 = vunpack.c.l.b16 %v33
  %v239 = vunpack.c.h.b16 %v33
  %v240 = vunpack.c.l.b16 %v34
  %v241 = vunpack.c.h.b16 %v34
  %v242 = vunpack.c.l.b16 %v35
  %v243 = vunpack.c.h.b16 %v35
  %v244 = vunpack.c.l.b16 %v36
  %v245 = vunpack.c.l.b16 %v37
  %v246 = vunpack.c.h.b16 %v37
  %v247 = vunpack.c.l.b16 %v38
  %v248 = vunpack.c.h.b16 %v38
  %v249 = vunpack.c.l.b16 %v39
  %v250 = vunpack.c.h.b16 %v39
  %v251 = vunpack.c.l.b16 %v40
  %v252 = vunpack.c.h.b16 %v40
  %v253 = vunpack.c.l.b16 %v41
  %v254 = vpack.c.b16 %v227, %v218
  %v255 = vpack.c.b16 %v228, %v219
  %v256 = vpack.c.b16 %v229, %v220
  %v257 = vpack.c.b16 %v230, %v221
  %v258 = vpack.c.b16 %v231, %v222
  %v259 = vpack.c.b16 %v232, %v223
  %v260 = vpack.c.b16 %v233, %v224
  %v261 = vpack.c.b16 %v234, %v225
  %v262 = vpack.c.b16 %v235, %v226
  %v263 = vpack.c.b16 %v245, %v236
  %v264 = vpack.c.b16 %v246, %v237
  %v265 = vpack.c.b16 %v247, %v238
  %v266 = vpack.c.b16 %v248, %v239
  %v267 = vpack.c.b16 %v249, %v240
  %v268 = vpack.c.b16 %v250, %v241
  %v269 = vpack.c.b16 %v251, %v242
  %v270 = vpack.c.b16 %v252, %v243
  %v271 = vpack.c.b16 %v253, %v244
  %v434 = vunpack.c.l.b16 %v42
  %v435 = vunpack.c.h.b16 %v42
  %v436 = vunpack.c.l.b16 %v43
  %v437 = vunpack.c.h.b16 %v43
  %v438 = vunpack.c.l.b16 %v44
  %v439 = vunpack.c.h.b16 %v44
  %v440 = vunpack.c.l.b16 %v45
  %v441 = vunpack.c.h.b16 %v45
  %v442 = vunpack.c.l.b16 %v46
  %v443 = vunpack.c.h.b16 %v46
  %v444 = vunpack.c.l.b16 %v47
  %v445 = vunpack.c.h.b16 %v47
  %v446 = vunpack.c.l.b16 %v48
  %v447 = vunpack.c.h.b16 %v48
  %v448 = vunpack.c.l.b16 %v49
  %v449 = vunpack.c.h.b16 %v49
  %v450 = vunpack.c.l.b16 %v50
  %v451 = vunpack.c.h.b16 %v50
  %v452 = vunpack.c.l.b16 %v51
  %v453 = vunpack.c.h.b16 %v51
  %v454 = vunpack.c.l.b16 %v52
  %v455 = vunpack.c.h.b16 %v52
  %v456 = vunpack.c.l.b16 %v53
  %v457 = vunpack.c.h.b16 %v53
  %v458 = vunpack.c.l.b16 %v54
  %v459 = vunpack.c.h.b16 %v54
  %v460 = vunpack.c.l.b16 %v55
  %v461 = vunpack.c.h.b16 %v55
  %v462 = vunpack.c.l.b16 %v56
  %v463 = vunpack.c.h.b16 %v56
  %v464 = vunpack.c.l.b16 %v57
  %v465 = vunpack.c.h.b16 %v57
  %v466 = vunpack.c.l.b16 %v58
  %v467 = vunpack.c.h.b16 %v58
  %v468 = vunpack.c.l.b16 %v59
  %v469 = vunpack.c.h.b16 %v59
  %v470 = vunpack.c.l.b16 %v60
  %v471 = vunpack.c.h.b16 %v60
  %v472 = vunpack.c.l.b16 %v61
  %v473 = vunpack.c.h.b16 %v61
  %v474 = vunpack.c.l.b16 %v62
  %v475 = vunpack.c.h.b16 %v62
  %v476 = vunpack.c.l.b16 %v63
  %v477 = vunpack.c.h.b16 %v63
  %v478 = vunpack.c.l.b16 %v64
  %v479 = vunpack.c.h.b16 %v64
  %v480 = vunpack.c.l.b16 %v65
  %v481 = vunpack.c.h.b16 %v65
  %v482 = vunpack.c.l.b16 %v66
  %v483 = vunpack.c.h.b16 %v66
  %v484 = vunpack.c.l.b16 %v67
  %v485 = vunpack.c.h.b16 %v67
  %v486 = vunpack.c.l.b16 %v68
  %v487 = vunpack.c.h.b16 %v68
  %v488 = vunpack.c.l.b16 %v69
  %v489 = vunpack.c.h.b16 %v69
  %v490 = vunpack.c.l.b16 %v70
  %v491 = vunpack.c.h.b16 %v70
  %v492 = vunpack.c.l.b16 %v71
  %v493 = vunpack.c.h.b16 %v71
  %v494 = vunpack.c.l.b16 %v72
  %v495 = vunpack.c.h.b16 %v72
  %v496 = vunpack.c.l.b16 %v73
  %v497 = vunpack.c.h.b16 %v73
  %v498 = vunpack.c.l.b16 %v74
  %v499 = vunpack.c.h.b16 %v74
  %v500 = vunpack.c.l.b16 %v75
  %v501 = vunpack.c.h.b16 %v75
  %v502 = vunpack.c.l.b16 %v76
  %v503 = vunpack.c.h.b16 %v76
  %v504 = vunpack.c.l.b16 %v77
  %v505 = vunpack.c.h.b16 %v77
  %v506 = vunpack.c.l.b16 %v78
  %v507 = vunpack.c.h.b16 %v78
  %v508 = vunpack.c.l.b16 %v79
  %v509 = vunpack.c.h.b16 %v79
  %v510 = vunpack.c.l.b16 %v80
  %v511 = vunpack.c.h.b16 %v80
  %v512 = vunpack.c.l.b16 %v81
  %v513 = vunpack.c.h.b16 %v81
  %v514 = vunpack.c.l.b16 %v82
  %v515 = vunpack.c.h.b16 %v82
  %v516 = vunpack.c.l.b16 %v83
  %v517 = vunpack.c.h.b16 %v83
  %v518 = vunpack.c.l.b16 %v84
  %v519 = vunpack.c.h.b16 %v84
  %v520 = vunpack.c.l.b16 %v85
  %v521 = vunpack.c.h.b16 %v85
  %v522 = vunpack.c.l.b16 %v86
  %v523 = vunpack.c.h.b16 %v86
  %v524 = vunpack.c.l.b16 %v87
  %v525 = vunpack.c.h.b16 %v87
  %v526 = vunpack.c.l.b16 %v88
  %v527 = vunpack.c.h.b16 %v88
  %v528 = vunpack.c.l.b16 %v89
  %v529 = vunpack.c.h.b16 %v89
  %v530 = vunpack.c.l.b16 %v90
  %v531 = vunpack.c.h.b16 %v90
  %v532 = vunpack.c.l.b16 %v91
  %v533 = vunpack.c.h.b16 %v91
  %v534 = vunpack.c.l.b16 %v92
  %v535 = vunpack.c.h.b16 %v92
  %v536 = vunpack.c.l.b16 %v93
  %v537 = vunpack.c.h.b16 %v93
  %v538 = vunpack.c.l.b16 %v94
  %v539 = vunpack.c.h.b16 %v94
  %v540 = vunpack.c.l.b16 %v95
  %v541 = vunpack.c.h.b16 %v95
  %v542 = vunpack.c.l.b16 %v96
  %v543 = vunpack.c.h.b16 %v96
  %v544 = vunpack.c.l.b16 %v97
  %v545 = vunpack.c.h.b16 %v97
  %v546 = vunpack.c.l.b16 %v98
  %v547 = vunpack.c.h.b16 %v98
  %v548 = vunpack.c.l.b16 %v99
  %v549 = vunpack.c.h.b16 %v99
  %v550 = vunpack.c.l.b16 %v100
  %v551 = vunpack.c.h.b16 %v100
  %v552 = vunpack.c.l.b16 %v101
  %v553 = vunpack.c.h.b16 %v101
  %v554 = vunpack.c.l.b16 %v102
  %v555 = vunpack.c.h.b16 %v102
  %v556 = vunpack.c.l.b16 %v103
  %v557 = vunpack.c.h.b16 %v103
  %v558 = vunpack.c.l.b16 %v104
  %v559 = vunpack.c.h.b16 %v104
  %v560 = vunpack.c.l.b16 %v105
  %v561 = vunpack.c.h.b16 %v105
  %v562 = vunpack.c.l.b16 %v106
  %v563 = vunpack.c.h.b16 %v106
  %v564 = vunpack.c.l.b16 %v107
  %v565 = vunpack.c.h.b16 %v107
  %v566 = vunpack.c.l.b16 %v108
  %v567 = vunpack.c.h.b16 %v108
  %v568 = vunpack.c.l.b16 %v109
  %v569 = vunpack.c.h.b16 %v109
  %v570 = vunpack.c.l.b16 %v110
  %v571 = vunpack.c.h.b16 %v110
  %v572 = vunpack.c.l.b16 %v111
  %v573 = vunpack.c.h.b16 %v111
  %v574 = vunpack.c.l.b16 %v112
  %v575 = vunpack.c.h.b16 %v112
  %v576 = vunpack.c.l.b16 %v113
  %v577 = vunpack.c.h.b16 %v113
  %v578 = vunpack.c.l.b16 %v114
  %v579 = vunpack.c.h.b16 %v114
  %v580 = vunpack.c.l.b16 %v115
  %v581 = vunpack.c.h.b16 %v115
  %v582 = vunpack.c.l.b16 %v116
  %v583 = vunpack.c.h.b16 %v116
  %v584 = vunpack.c.l.b16 %v117
  %v585 = vunpack.c.h.b16 %v117
  %v586 = vunpack.c.l.b16 %v118
  %v587 = vunpack.c.h.b16 %v118
  %v588 = vunpack.c.l.b16 %v119
  %v589 = vunpack.c.h.b16 %v119
  %v590 = vunpack.c.l.b16 %v120
  %v591 = vunpack.c.h.b16 %v120
  %v592 = vunpack.c.l.b16 %v121
  %v593 = vunpack.c.h.b16 %v121
  %v594 = vunpack.c.l.b16 %v122
  %v595 = vunpack.c.h.b16 %v122
  %v596 = vunpack.c.l.b16 %v123
  %v597 = vunpack.c.h.b16 %v123
  %v598 = vunpack.c.l.b16 %v124
  %v599 = vunpack.c.h.b16 %v124
  %v600 = vunpack.c.l.b16 %v125
  %v601 = vunpack.c.h.b16 %v125
  %v602 = vunpack.c.l.b16 %v126
  %v603 = vunpack.c.h.b16 %v126
  %v604 = vunpack.c.l.b16 %v127
  %v605 = vunpack.c.h.b16 %v127
  %v606 = vunpack.c.l.b16 %v128
  %v607 = vunpack.c.h.b16 %v128
  %v608 = vunpack.c.l.b16 %v129
  %v609 = vunpack.c.h.b16 %v129
  %v610 = vunpack.c.l.b16 %v130
  %v611 = vunpack.c.h.b16 %v130
  %v612 = vunpack.c.l.b16 %v131
  %v613 = vunpack.c.h.b16 %v131
  %v614 = vunpack.c.l.b16 %v132
  %v615 = vunpack.c.h.b16 %v132
  %v616 = vunpack.c.l.b16 %v133
  %v617 = vunpack.c.h.b16 %v133
  %v618 = vunpack.c.l.b16 %v134
  %v619 = vunpack.c.h.b16 %v134
  %v620 = vunpack.c.l.b16 %v135
  %v621 = vunpack.c.h.b16 %v135
  %v622 = vunpack.c.l.b16 %v136
  %v623 = vunpack.c.h.b16 %v136
  %v624 = vunpack.c.l.b16 %v137
  %v625 = vunpack.c.h.b16 %v137
  %v626 = vunpack.c.l.b16 %v138
  %v627 = vunpack.c.h.b16 %v138
  %v628 = vunpack.c.l.b16 %v139
  %v629 = vunpack.c.h.b16 %v139
  %v630 = vunpack.c.l.b16 %v140
  %v631 = vunpack.c.h.b16 %v140
  %v632 = vunpack.c.l.b16 %v141
  %v633 = vunpack.c.h.b16 %v141
  %v634 = vunpack.c.l.b16 %v142
  %v635 = vunpack.c.h.b16 %v142
  %v636 = vunpack.c.l.b16 %v143
  %v637 = vunpack.c.h.b16 %v143
  %v638 = vunpack.c.l.b16 %v144
  %v639 = vunpack.c.h.b16 %v144
  %v640 = vunpack.c.l.b16 %v145
  %v641 = vunpack.c.h.b16 %v145
  %v642 = vunpack.c.l.b16 %v146
  %v643 = vunpack.c.h.b16 %v146
  %v644 = vunpack.c.l.b16 %v147
  %v645 = vunpack.c.h.b16 %v147
  %v646 = vunpack.c.l.b16 %v148
  %v647 = vunpack.c.h.b16 %v148
  %v648 = vunpack.c.l.b16 %v149
  %v649 = vunpack.c.h.b16 %v149
  %v650 = vunpack.c.l.b16 %v150
  %v651 = vunpack.c.h.b16 %v150
  %v652 = vunpack.c.l.b16 %v151
  %v653 = vunpack.c.h.b16 %v151
  %v654 = vunpack.c.l.b16 %v152
  %v655 = vunpack.c.h.b16 %v152
  %v656 = vunpack.c.l.b16 %v153
  %v657 = vunpack.c.h.b16 %v153
  %v658 = vunpack.c.l.b16 %v154
  %v659 = vunpack.c.h.b16 %v154
  %v660 = vunpack.c.l.b16 %v155
  %v661 = vunpack.c.h.b16 %v155
  %v662 = vunpack.c.l.b16 %v156
  %v663 = vunpack.c.h.b16 %v156
  %v664 = vunpack.c.l.b16 %v157
  %v665 = vunpack.c.h.b16 %v157
  %v666 = vunpack.c.l.b16 %v158
  %v667 = vunpack.c.h.b16 %v158
  %v668 = vunpack.c.l.b16 %v159
  %v669 = vunpack.c.h.b16 %v159
  %v670 = vunpack.c.l.b16 %v160
  %v671 = vunpack.c.h.b16 %v160
  %v672 = vunpack.c.l.b16 %v161
  %v673 = vunpack.c.h.b16 %v161
  %v674 = vunpack.c.l.b16 %v162
  %v675 = vunpack.c.h.b16 %v162
  %v676 = vunpack.c.l.b16 %v163
  %v677 = vunpack.c.h.b16 %v163
  %v678 = vunpack.c.l.b16 %v164
  %v679 = vunpack.c.h.b16 %v164
  %v680 = vunpack.c.l.b16 %v165
  %v681 = vunpack.c.h.b16 %v165
  %v682 = vunpack.c.l.b16 %v166
  %v683 = vunpack.c.h.b16 %v166
  %v684 = vunpack.c.l.b16 %v167
  %v685 = vunpack.c.h.b16 %v167
  %v686 = vunpack.c.l.b16 %v168
  %v687 = vunpack.c.h.b16 %v168
  %v688 = vunpack.c.l.b16 %v169
  %v689 = vunpack.c.h.b16 %v169
  %v690 = vunpack.c.l.b16 %v170
  %v691 = vunpack.c.h.b16 %v170
  %v692 = vunpack.c.l.b16 %v171
  %v693 = vunpack.c.h.b16 %v171
  %v694 = vunpack.c.l.b16 %v172
  %v695 = vunpack.c.h.b16 %v172
  %v696 = vunpack.c.l.b16 %v173
  %v697 = vunpack.c.h.b16 %v173
  %v698 = vunpack.c.l.b16 %v174
  %v699 = vunpack.c.h.b16 %v174
  %v700 = vunpack.c.l.b16 %v175
  %v701 = vunpack.c.h.b16 %v175
  %v702 = vunpack.c.l.b16 %v176
  %v703 = vunpack.c.h.b16 %v176
  %v704 = vunpack.c.l.b16 %v177
  %v705 = vunpack.c.h.b16 %v177
  %v706 = vunpack.c.l.b16 %v178
  %v707 = vunpack.c.h.b16 %v178
  %v708 = vunpack.c.l.b16 %v179
  %v709 = vunpack.c.h.b16 %v179
  %v710 = vunpack.c.l.b16 %v180
  %v711 = vunpack.c.h.b16 %v180
  %v712 = vunpack.c.l.b16 %v181
  %v713 = vunpack.c.h.b16 %v181
  %v714 = vunpack.c.l.b16 %v182
  %v715 = vunpack.c.h.b16 %v182
  %v716 = vunpack.c.l.b16 %v183
  %v717 = vunpack.c.h.b16 %v183
  %v718 = vunpack.c.l.b16 %v184
  %v719 = vunpack.c.h.b16 %v184
  %v720 = vunpack.c.l.b16 %v185
  %v721 = vunpack.c.h.b16 %v185
  %v722 = vpack.c.b16 %v436, %v434
  %v723 = vpack.c.b16 %v437, %v435
  %v724 = vpack.c.b16 %v440, %v438
  %v725 = vpack.c.b16 %v441, %v439
  %v726 = vpack.c.b16 %v444, %v442
  %v727 = vpack.c.b16 %v445, %v443
  %v728 = vpack.c.b16 %v448, %v446
  %v729 = vpack.c.b16 %v449, %v447
  %v730 = vpack.c.b16 %v452, %v450
  %v731 = vpack.c.b16 %v453, %v451
  %v732 = vpack.c.b16 %v456, %v454
  %v733 = vpack.c.b16 %v457, %v455
  %v734 = vpack.c.b16 %v460, %v458
  %v735 = vpack.c.b16 %v461, %v459
  %v736 = vpack.c.b16 %v464, %v462
  %v737 = vpack.c.b16 %v465, %v463
  %v738 = vpack.c.b16 %v468, %v466
  %v739 = vpack.c.b16 %v469, %v467
  %v740 = vpack.c.b16 %v472, %v470
  %v741 = vpack.c.b16 %v473, %v471
  %v742 = vpack.c.b16 %v476, %v474
  %v743 = vpack.c.b16 %v477, %v475
  %v744 = vpack.c.b16 %v480, %v478
  %v745 = vpack.c.b16 %v481, %v479
  %v746 = vpack.c.b16 %v484, %v482
  %v747 = vpack.c.b16 %v485, %v483
  %v748 = vpack.c.b16 %v488, %v486
  %v749 = vpack.c.b16 %v489, %v487
  %v750 = vpack.c.b16 %v492, %v490
  %v751 = vpack.c.b16 %v493, %v491
  %v752 = vpack.c.b16 %v496, %v494
  %v753 = vpack.c.b16 %v497, %v495
  %v754 = vpack.c.b16 %v500, %v498
  %v755 = vpack.c.b16 %v501, %v499
  %v756 = vpack.c.b16 %v504, %v502
  %v757 = vpack.c.b16 %v505, %v503
  %v758 = vpack.c.b16 %v508, %v506
  %v759 = vpack.c.b16 %v509, %v507
  %v760 = vpack.c.b16 %v512, %v510
  %v761 = vpack.c.b16 %v513, %v511
  %v762 = vpack.c.b16 %v516, %v514
  %v763 = vpack.c.b16 %v517, %v515
  %v764 = vpack.c.b16 %v520, %v518
  %v765 = vpack.c.b16 %v521, %v519
  %v766 = vpack.c.b16 %v524, %v522
  %v767 = vpack.c.b16 %v525, %v523
  %v768 = vpack.c.b16 %v528, %v526
  %v769 = vpack.c.b16 %v529, %v527
  %v770 = vpack.c.b16 %v532, %v530
  %v771 = vpack.c.b16 %v533, %v531
  %v772 = vpack.c.b16 %v536, %v534
  %v773 = vpack.c.b16 %v537, %v535
  %v774 = vpack.c.b16 %v540, %v538
  %v775 = vpack.c.b16 %v541, %v539
  %v776 = vpack.c.b16 %v544, %v542
  %v777 = vpack.c.b16 %v545, %v543
  %v778 = vpack.c.b16 %v548, %v546
  %v779 = vpack.c.b16 %v549, %v547
  %v780 = vpack.c.b16 %v552, %v550
  %v781 = vpack.c.b16 %v553, %v551
  %v782 = vpack.c.b16 %v556, %v554
  %v783 = vpack.c.b16 %v557, %v555
  %v784 = vpack.c.b16 %v560, %v558
  %v785 = vpack.c.b16 %v561, %v559
  %v786 = vpack.c.b16 %v564, %v562
  %v787 = vpack.c.b16 %v565, %v563
  %v788 = vpack.c.b16 %v568, %v566
  %v789 = vpack.c.b16 %v569, %v567
  %v790 = vpack.c.b16 %v572, %v570
  %v791 = vpack.c.b16 %v573, %v571
  %v792 = vpack.c.b16 %v576, %v574
  %v793 = vpack.c.b16 %v577, %v575
  %v794 = vpack.c.b16 %v580, %v578
  %v795 = vpack.c.b16 %v581, %v579
  %v796 = vpack.c.b16 %v584, %v582
  %v797 = vpack.c.b16 %v585, %v583
  %v798 = vpack.c.b16 %v588, %v586
  %v799 = vpack.c.b16 %v589, %v587
  %v800 = vpack.c.b16 %v592, %v590
  %v801 = vpack.c.b16 %v593, %v591
  %v802 = vpack.c.b16 %v596, %v594
  %v803 = vpack.c.b16 %v597, %v595
  %v804 = vpack.c.b16 %v600, %v598
  %v805 = vpack.c.b16 %v601, %v599
  %v806 = vpack.c.b16 %v604, %v602
  %v807 = vpack.c.b16 %v605, %v603
  %v808 = vpack.c.b16 %v608, %v606
  %v809 = vpack.c.b16 %v609, %v607
  %v810 = vpack.c.b16 %v612, %v610
  %v811 = vpack.c.b16 %v613, %v611
  %v812 = vpack.c.b16 %v616, %v614
  %v813 = vpack.c.b16 %v617, %v615
  %v814 = vpack.c.b16 %v620, %v618
  %v815 = vpack.c.b16 %v621, %v619
  %v816 = vpack.c.b16 %v624, %v622
  %v817 = vpack.c.b16 %v625, %v623
  %v818 = vpack.c.b16 %v628, %v626
  %v819 = vpack.c.b16 %v629, %v627
  %v820 = vpack.c.b16 %v632, %v630
  %v821 = vpack.c.b16 %v633, %v631
  %v822 = vpack.c.b16 %v636, %v634
  %v823 = vpack.c.b16 %v637, %v635
  %v824 = vpack.c.b16 %v640, %v638
  %v825 = vpack.c.b16 %v641, %v639
  %v826 = vpack.c.b16 %v644, %v642
  %v827 = vpack.c.b16 %v645, %v643
  %v828 = vpack.c.b16 %v648, %v646
  %v829 = vpack.c.b16 %v649, %v647
  %v830 = vpack.c.b16 %v652, %v650
  %v831 = vpack.c.b16 %v653, %v651
  %v832 = vpack.c.b16 %v656, %v654
  %v833 = vpack.c.b16 %v657, %v655
  %v834 = vpack.c.b16 %v660, %v658
  %v835 = vpack.c.b16 %v661, %v659
  %v836 = vpack.c.b16 %v664, %v662
  %v837 = vpack.c.b16 %v665, %v663
  %v838 = vpack.c.b16 %v668, %v666
  %v839 = vpack.c.b16 %v669, %v667
  %v840 = vpack.c.b16 %v672, %v670
  %v841 = vpack.c.b16 %v673, %v671
  %v842 = vpack.c.b16 %v676, %v674
  %v843 = vpack.c.b16 %v677, %v675
  %v844 = vpack.c.b16 %v680, %v678
  %v845 = vpack.c.b16 %v681, %v679
  %v846 = vpack.c.b16 %v684, %v682
  %v847 = vpack.c.b16 %v685, %v683
  %v848 = vpack.c.b16 %v688, %v686
  %v849 = vpack.c.b16 %v689, %v687
  %v850 = vpack.c.b16 %v692, %v690
  %v851 = vpack.c.b16 %v693, %v691
  %v852 = vpack.c.b16 %v696, %v694
  %v853 = vpack.c.b16 %v697, %v695
  %v854 = vpack.c.b16 %v700, %v698
  %v855 = vpack.c.b16 %v701, %v699
  %v856 = vpack.c.b16 %v704, %v702
  %v857 = vpack.c.b16 %v705, %v703
  %v858 = vpack.c.b16 %v708, %v706
  %v859 = vpack.c.b16 %v709, %v707
  %v860 = vpack.c.b16 %v712, %v710
  %v861 = vpack.c.b16 %v713, %v711
  %v862 = vpack.c.b16 %v716, %v714
  %v863 = vpack.c.b16 %v717, %v715
  %v864 = vpack.c.b16 %v720, %v718
  %v865 = vpack.c.b16 %v721, %v719
  %1010 = vmatprep.subr.bf16.mxu0 %v723
  %1011 = vmatpush1.bf16.msra.mxu0 %v722
  %1012 = vmatprep.subr.bf16.mxu0 %v725
  %1013 = vmatpush1.bf16.msra.mxu0 %v724
  %1014 = vmatprep.subr.bf16.mxu0 %v727
  %1015 = vmatpush1.bf16.msra.mxu0 %v726
  %1016 = vmatprep.subr.bf16.mxu0 %v729
  %1017 = vmatpush1.bf16.msra.mxu0 %v728
  %1018 = vmatprep.subr.bf16.mxu0 %v731
  %1019 = vmatpush1.bf16.msra.mxu0 %v730
  %1020 = vmatprep.subr.bf16.mxu0 %v733
  %1021 = vmatpush1.bf16.msra.mxu0 %v732
  %1022 = vmatprep.subr.bf16.mxu0 %v735
  %1023 = vmatpush1.bf16.msra.mxu0 %v734
  %1024 = vmatprep.subr.bf16.mxu0 %v737
  %1025 = vmatpush1.bf16.msra.mxu0 %v736
  %1026 = vmatprep.subr.bf16.mxu0 %v739
  %1027 = vmatpush1.bf16.msra.mxu0 %v738
  %1028 = vmatprep.subr.bf16.mxu0 %v741
  %1029 = vmatpush1.bf16.msra.mxu0 %v740
  %1030 = vmatprep.subr.bf16.mxu0 %v743
  %1031 = vmatpush1.bf16.msra.mxu0 %v742
  %1032 = vmatprep.subr.bf16.mxu0 %v745
  %1033 = vmatpush1.bf16.msra.mxu0 %v744
  %1034 = vmatprep.subr.bf16.mxu0 %v747
  %1035 = vmatpush1.bf16.msra.mxu0 %v746
  %1036 = vmatprep.subr.bf16.mxu0 %v749
  %1037 = vmatpush1.bf16.msra.mxu0 %v748
  %1038 = vmatprep.subr.bf16.mxu0 %v751
  %1039 = vmatpush1.bf16.msra.mxu0 %v750
  %1040 = vmatprep.subr.bf16.mxu0 %v753
  %1041 = vmatpush1.bf16.msra.mxu0 %v752
  %1042 = vmatprep.mubr.bf16.mxu0 %v255
  %1043 = vmatmul.mubr.bf16.gmra.mrb[0].mxu0 %v254
  %v1044 = vpop.f32.mrb[0].mxu0
  %v1045 = vadd.f32 %v191, %v1044
  %v1046 = vpop.f32.mrb[0].mxu0
  %v1047 = vadd.f32 %v195, %v1046
  %v1048 = vpop.f32.mrb[0].mxu0
  %v1049 = vadd.f32 %v191, %v1048
  %v1050 = vpop.f32.mrb[0].mxu0
  %v1051 = vadd.f32 %v195, %v1050
  %1052 = vmatprep.mubr.bf16.mxu0 %v264
  %1053 = vmatmul.mubr.bf16.gmra.mrb[0].mxu0 %v263
  %v1054 = vpop.f32.mrb[0].mxu0
  %v1055 = vadd.f32 %v191, %v1054
  %v1056 = vpop.f32.mrb[0].mxu0
  %v1057 = vadd.f32 %v195, %v1056
  %v1058 = vpop.f32.mrb[0].mxu0
  %v1059 = vadd.f32 %v191, %v1058
  %v1060 = vpop.f32.mrb[0].mxu0
  %v1061 = vadd.f32 %v195, %v1060
  %1062 = vdwg.mxu0
  %1063 = vmatprep.subr.bf16.mxu0 %v755
  %1064 = vmatpush1.bf16.msra.mxu0 %v754
  %1065 = vmatprep.subr.bf16.mxu0 %v757
  %1066 = vmatpush1.bf16.msra.mxu0 %v756
  %1067 = vmatprep.subr.bf16.mxu0 %v759
  %1068 = vmatpush1.bf16.msra.mxu0 %v758
  %1069 = vmatprep.subr.bf16.mxu0 %v761
  %1070 = vmatpush1.bf16.msra.mxu0 %v760
  %1071 = vmatprep.subr.bf16.mxu0 %v763
  %1072 = vmatpush1.bf16.msra.mxu0 %v762
  %1073 = vmatprep.subr.bf16.mxu0 %v765
  %1074 = vmatpush1.bf16.msra.mxu0 %v764
  %1075 = vmatprep.subr.bf16.mxu0 %v767
  %1076 = vmatpush1.bf16.msra.mxu0 %v766
  %1077 = vmatprep.subr.bf16.mxu0 %v769
  %1078 = vmatpush1.bf16.msra.mxu0 %v768
  %1079 = vmatprep.subr.bf16.mxu0 %v771
  %1080 = vmatpush1.bf16.msra.mxu0 %v770
  %1081 = vmatprep.subr.bf16.mxu0 %v773
  %1082 = vmatpush1.bf16.msra.mxu0 %v772
  %1083 = vmatprep.subr.bf16.mxu0 %v775
  %1084 = vmatpush1.bf16.msra.mxu0 %v774
  %1085 = vmatprep.subr.bf16.mxu0 %v777
  %1086 = vmatpush1.bf16.msra.mxu0 %v776
  %1087 = vmatprep.subr.bf16.mxu0 %v779
  %1088 = vmatpush1.bf16.msra.mxu0 %v778
  %1089 = vmatprep.subr.bf16.mxu0 %v781
  %1090 = vmatpush1.bf16.msra.mxu0 %v780
  %1091 = vmatprep.subr.bf16.mxu0 %v783
  %1092 = vmatpush1.bf16.msra.mxu0 %v782
  %1093 = vmatprep.subr.bf16.mxu0 %v785
  %1094 = vmatpush1.bf16.msra.mxu0 %v784
  %1095 = vmatprep.mubr.bf16.mxu0 %v257
  %1096 = vmatmul.mubr.bf16.gmra.mrb[0].mxu0 %v256
  %v1097 = vpop.f32.mrb[0].mxu0
  %v1098 = vadd.f32 %v1045, %v1097
  %v1099 = vpop.f32.mrb[0].mxu0
  %v1100 = vadd.f32 %v1047, %v1099
  %v1101 = vpop.f32.mrb[0].mxu0
  %v1102 = vadd.f32 %v1049, %v1101
  %v1103 = vpop.f32.mrb[0].mxu0
  %v1104 = vadd.f32 %v1051, %v1103
  %1105 = vmatprep.mubr.bf16.mxu0 %v266
  %1106 = vmatmul.mubr.bf16.gmra.mrb[0].mxu0 %v265
  %v1107 = vpop.f32.mrb[0].mxu0
  %v1108 = vadd.f32 %v1055, %v1107
  %v1109 = vpop.f32.mrb[0].mxu0
  %v1110 = vadd.f32 %v1057, %v1109
  %v1111 = vpop.f32.mrb[0].mxu0
  %v1112 = vadd.f32 %v1059, %v1111
  %v1113 = vpop.f32.mrb[0].mxu0
  %v1114 = vadd.f32 %v1061, %v1113
  %1115 = vdwg.mxu0
  %1116 = vmatprep.subr.bf16.mxu0 %v787
  %1117 = vmatpush1.bf16.msra.mxu0 %v786
  %1118 = vmatprep.subr.bf16.mxu0 %v789
  %1119 = vmatpush1.bf16.msra.mxu0 %v788
  %1120 = vmatprep.subr.bf16.mxu0 %v791
  %1121 = vmatpush1.bf16.msra.mxu0 %v790
  %1122 = vmatprep.subr.bf16.mxu0 %v793
  %1123 = vmatpush1.bf16.msra.mxu0 %v792
  %1124 = vmatprep.subr.bf16.mxu0 %v795
  %1125 = vmatpush1.bf16.msra.mxu0 %v794
  %1126 = vmatprep.subr.bf16.mxu0 %v797
  %1127 = vmatpush1.bf16.msra.mxu0 %v796
  %1128 = vmatprep.subr.bf16.mxu0 %v799
  %1129 = vmatpush1.bf16.msra.mxu0 %v798
  %1130 = vmatprep.subr.bf16.mxu0 %v801
  %1131 = vmatpush1.bf16.msra.mxu0 %v800
  %1132 = vmatprep.subr.bf16.mxu0 %v803
  %1133 = vmatpush1.bf16.msra.mxu0 %v802
  %1134 = vmatprep.subr.bf16.mxu0 %v805
  %1135 = vmatpush1.bf16.msra.mxu0 %v804
  %1136 = vmatprep.subr.bf16.mxu0 %v807
  %1137 = vmatpush1.bf16.msra.mxu0 %v806
  %1138 = vmatprep.subr.bf16.mxu0 %v809
  %1139 = vmatpush1.bf16.msra.mxu0 %v808
  %1140 = vmatprep.subr.bf16.mxu0 %v811
  %1141 = vmatpush1.bf16.msra.mxu0 %v810
  %1142 = vmatprep.subr.bf16.mxu0 %v813
  %1143 = vmatpush1.bf16.msra.mxu0 %v812
  %1144 = vmatprep.subr.bf16.mxu0 %v815
  %1145 = vmatpush1.bf16.msra.mxu0 %v814
  %1146 = vmatprep.subr.bf16.mxu0 %v817
  %1147 = vmatpush1.bf16.msra.mxu0 %v816
  %1148 = vmatprep.mubr.bf16.mxu0 %v259
  %1149 = vmatmul.mubr.bf16.gmra.mrb[0].mxu0 %v258
  %v1150 = vpop.f32.mrb[0].mxu0
  %v1151 = vadd.f32 %v1098, %v1150
  %v1152 = vpop.f32.mrb[0].mxu0
  %v1153 = vadd.f32 %v1100, %v1152
  %v1154 = vpop.f32.mrb[0].mxu0
  %v1155 = vadd.f32 %v1102, %v1154
  %v1156 = vpop.f32.mrb[0].mxu0
  %v1157 = vadd.f32 %v1104, %v1156
  %1158 = vmatprep.mubr.bf16.mxu0 %v268
  %1159 = vmatmul.mubr.bf16.gmra.mrb[0].mxu0 %v267
  %v1160 = vpop.f32.mrb[0].mxu0
  %v1161 = vadd.f32 %v1108, %v1160
  %v1162 = vpop.f32.mrb[0].mxu0
  %v1163 = vadd.f32 %v1110, %v1162
  %v1164 = vpop.f32.mrb[0].mxu0
  %v1165 = vadd.f32 %v1112, %v1164
  %v1166 = vpop.f32.mrb[0].mxu0
  %v1167 = vadd.f32 %v1114, %v1166
  %1168 = vdwg.mxu0
  %1169 = vmatprep.subr.bf16.mxu0 %v819
  %1170 = vmatpush1.bf16.msra.mxu0 %v818
  %1171 = vmatprep.subr.bf16.mxu0 %v821
  %1172 = vmatpush1.bf16.msra.mxu0 %v820
  %1173 = vmatprep.subr.bf16.mxu0 %v823
  %1174 = vmatpush1.bf16.msra.mxu0 %v822
  %1175 = vmatprep.subr.bf16.mxu0 %v825
  %1176 = vmatpush1.bf16.msra.mxu0 %v824
  %1177 = vmatprep.subr.bf16.mxu0 %v827
  %1178 = vmatpush1.bf16.msra.mxu0 %v826
  %1179 = vmatprep.subr.bf16.mxu0 %v829
  %1180 = vmatpush1.bf16.msra.mxu0 %v828
  %1181 = vmatprep.subr.bf16.mxu0 %v831
  %1182 = vmatpush1.bf16.msra.mxu0 %v830
  %1183 = vmatprep.subr.bf16.mxu0 %v833
  %1184 = vmatpush1.bf16.msra.mxu0 %v832
  %1185 = vmatprep.subr.bf16.mxu0 %v835
  %1186 = vmatpush1.bf16.msra.mxu0 %v834
  %1187 = vmatprep.subr.bf16.mxu0 %v837
  %1188 = vmatpush1.bf16.msra.mxu0 %v836
  %1189 = vmatprep.subr.bf16.mxu0 %v839
  %1190 = vmatpush1.bf16.msra.mxu0 %v838
  %1191 = vmatprep.subr.bf16.mxu0 %v841
  %1192 = vmatpush1.bf16.msra.mxu0 %v840
  %1193 = vmatprep.subr.bf16.mxu0 %v843
  %1194 = vmatpush1.bf16.msra.mxu0 %v842
  %1195 = vmatprep.subr.bf16.mxu0 %v845
  %1196 = vmatpush1.bf16.msra.mxu0 %v844
  %1197 = vmatprep.subr.bf16.mxu0 %v847
  %1198 = vmatpush1.bf16.msra.mxu0 %v846
  %1199 = vmatprep.subr.bf16.mxu0 %v849
  %1200 = vmatpush1.bf16.msra.mxu0 %v848
  %1201 = vmatprep.mubr.bf16.mxu0 %v261
  %1202 = vmatmul.mubr.bf16.gmra.mrb[0].mxu0 %v260
  %v1203 = vpop.f32.mrb[0].mxu0
  %v1204 = vadd.f32 %v1151, %v1203
  %v1205 = vpop.f32.mrb[0].mxu0
  %v1206 = vadd.f32 %v1153, %v1205
  %v1207 = vpop.f32.mrb[0].mxu0
  %v1208 = vadd.f32 %v1155, %v1207
  %v1209 = vpop.f32.mrb[0].mxu0
  %v1210 = vadd.f32 %v1157, %v1209
  %1211 = vmatprep.mubr.bf16.mxu0 %v270
  %1212 = vmatmul.mubr.bf16.gmra.mrb[0].mxu0 %v269
  %v1213 = vpop.f32.mrb[0].mxu0
  %v1214 = vadd.f32 %v1161, %v1213
  %v1215 = vpop.f32.mrb[0].mxu0
  %v1216 = vadd.f32 %v1163, %v1215
  %v1217 = vpop.f32.mrb[0].mxu0
  %v1218 = vadd.f32 %v1165, %v1217
  %v1219 = vpop.f32.mrb[0].mxu0
  %v1220 = vadd.f32 %v1167, %v1219
  %1221 = vdwg.mxu0
  %1222 = vmatprep.subr.bf16.mxu0 %v851
  %1223 = vmatpush1.bf16.msra.mxu0 %v850
  %1224 = vmatprep.subr.bf16.mxu0 %v853
  %1225 = vmatpush1.bf16.msra.mxu0 %v852
  %1226 = vmatprep.subr.bf16.mxu0 %v855
  %1227 = vmatpush1.bf16.msra.mxu0 %v854
  %1228 = vmatprep.subr.bf16.mxu0 %v857
  %1229 = vmatpush1.bf16.msra.mxu0 %v856
  %1230 = vmatprep.subr.bf16.mxu0 %v859
  %1231 = vmatpush1.bf16.msra.mxu0 %v858
  %1232 = vmatprep.subr.bf16.mxu0 %v861
  %1233 = vmatpush1.bf16.msra.mxu0 %v860
  %1234 = vmatprep.subr.bf16.mxu0 %v863
  %1235 = vmatpush1.bf16.msra.mxu0 %v862
  %1236 = vmatprep.subr.bf16.mxu0 %v865
  %1237 = vmatpush1.bf16.msra.mxu0 %v864
  %1238 = vmatprep.subr.bf16.mxu0 0
  %1239 = vmatpush1.bf16.msra.mxu0 0
  %1240 = vmatprep.subr.bf16.mxu0 0
  %1241 = vmatpush1.bf16.msra.mxu0 0
  %1242 = vmatprep.subr.bf16.mxu0 0
  %1243 = vmatpush1.bf16.msra.mxu0 0
  %1244 = vmatprep.subr.bf16.mxu0 0
  %1245 = vmatpush1.bf16.msra.mxu0 0
  %1246 = vmatprep.subr.bf16.mxu0 0
  %1247 = vmatpush1.bf16.msra.mxu0 0
  %1248 = vmatprep.subr.bf16.mxu0 0
  %1249 = vmatpush1.bf16.msra.mxu0 0
  %1250 = vmatprep.subr.bf16.mxu0 0
  %1251 = vmatpush1.bf16.msra.mxu0 0
  %1252 = vmatprep.subr.bf16.mxu0 0
  %1253 = vmatpush1.bf16.msra.mxu0 0
  %1254 = vmatprep.mubr.bf16.mxu0 0
  %1255 = vmatmul.mubr.bf16.gmra.mrb[0].mxu0 %v262
  %v1256 = vpop.f32.mrb[0].mxu0
  %v1257 = vadd.f32 %v1204, %v1256
  %v1258 = vpop.f32.mrb[0].mxu0
  %v1259 = vadd.f32 %v1206, %v1258
  %v1260 = vpop.f32.mrb[0].mxu0
  %v1261 = vadd.f32 %v1208, %v1260
  %v1262 = vpop.f32.mrb[0].mxu0
  %v1263 = vadd.f32 %v1210, %v1262
  %1264 = vmatprep.mubr.bf16.mxu0 0
  %1265 = vmatmul.mubr.bf16.gmra.mrb[0].mxu0 %v271
  %v1266 = vpop.f32.mrb[0].mxu0
  %v1267 = vadd.f32 %v1214, %v1266
  %v1268 = vpop.f32.mrb[0].mxu0
  %v1269 = vadd.f32 %v1216, %v1268
  %v1270 = vpop.f32.mrb[0].mxu0
  %v1271 = vadd.f32 %v1218, %v1270
  %v1272 = vpop.f32.mrb[0].mxu0
  %v1273 = vadd.f32 %v1220, %v1272
  %1274 = vdwg.mxu0
  %v1275 = vmax.f32 %v1257, 0.0
  %v1276 = vmax.f32 %v1259, 0.0
  %v1277 = vmax.f32 %v1261, 0.0
  %v1278 = vmax.f32 %v1263, 0.0
  %v1279 = vmax.f32 %v1267, 0.0
  %v1280 = vmax.f32 %v1269, 0.0
  %v1281 = vmax.f32 %v1271, 0.0
  %v1282 = vmax.f32 %v1273, 0.0
  %v1283 = vadd.f32 %v1275, %v1277
  %v1284 = vrot.slane %v1283, 4
  %v1285 = vadd.f32 %v1283, %v1284
  %v1286 = vrot.slane %v1285, 2
  %v1287 = vadd.f32 %v1285, %v1286
  %v1288 = vrot.slane %v1287, 1
  %v1289 = vadd.f32 %v1287, %v1288
  %v1290 = vadd.f32 %v1276, %v1278
  %v1291 = vrot.slane %v1290, 4
  %v1292 = vadd.f32 %v1290, %v1291
  %v1293 = vrot.slane %v1292, 2
  %v1294 = vadd.f32 %v1292, %v1293
  %v1295 = vrot.slane %v1294, 1
  %v1296 = vadd.f32 %v1294, %v1295
  %v1297 = vadd.f32 %v1279, %v1281
  %v1298 = vrot.slane %v1297, 4
  %v1299 = vadd.f32 %v1297, %v1298
  %v1300 = vrot.slane %v1299, 2
  %v1301 = vadd.f32 %v1299, %v1300
  %v1302 = vrot.slane %v1301, 1
  %v1303 = vadd.f32 %v1301, %v1302
  %v1304 = vadd.f32 %v1280, %v1282
  %v1305 = vrot.slane %v1304, 4
  %v1306 = vadd.f32 %v1304, %v1305
  %v1307 = vrot.slane %v1306, 2
  %v1308 = vadd.f32 %v1306, %v1307
  %v1309 = vrot.slane %v1308, 1
  %v1310 = vadd.f32 %v1308, %v1309
  %v1311 = vrcp.pop 16.0
  %v1312 = vmul.f32 %v1289, %v1311
  %v1313 = vmul.f32 %v1296, %v1311
  %v1314 = vmul.f32 %v1303, %v1311
  %v1315 = vmul.f32 %v1310, %v1311
  %v1316 = vld [vmem:[%s3] sm:$0x3]
  %v1318 = vlaneseq
  %v1319 = vshrl.u32 %v1318, 7
  %v1320 = vsub.s32 0, %v1319
  %v1321 = vrot.slane %v1316, %v1320
  %v1322 = vlaneseq
  %v1323 = vshrl.u32 %v1322, 7
  %v1324 = vsub.s32 1, %v1323
  %v1325 = vrot.slane %v1316, %v1324
  %v1328 = vmul.f32 %v1312, %v1321
  %v1329 = vmul.f32 %v1313, %v1325
  %v1330 = vmul.f32 %v1314, %v1321
  %v1331 = vmul.f32 %v1315, %v1325
  %v1336 = vrot.slane %v1330, 7
  %vm1337 = vcmask 1041409
  %v1338 = vsel %vm1337, %v1336, %v1328
  %v1339 = vrot.slane %v1331, 7
  %v1340 = vsel %vm1337, %v1339, %v1329
  %vm1343 = vcmask 1041408
  %v1344 = vsel %vm1343, %v1338, 0.0
  %v1345 = vsel %vm1343, %v1340, 0.0
  %v1346 = vadd.f32 %v1344, %v1345
  %1347 = vadd.xlane.f32.xlu0 %v1346
  %v1348 = vpop.xlane.xlu0 %1347
  %s1349 = sld [smem:[#allocation2]]
  %v1350 = vstv %s1349
  %v1351 = vadd.f32 %v1348, %v1350
  %vm1352 = vcmask 1024
  %1353 = vst.msk [vmem:[%s5] sm:$0x3] %vm1352, %v1351
  // Predicated region
  $region22: #{quality_part_forward.1} parent=0 // pred_check
    _
  $region23: #{quality_part_forward.1} parent=0 // pred_check_branch
    %1355 = sbr.rel (0) target = $region25
  $region24: #{quality_part_forward.1} parent=0 // pred_region
    _
  $region25: #{quality_part_forward.1} parent=0 // pred_fallthru
    _
  // Predicated region
  $region26: #{quality_part_forward.1} parent=0 // pred_check
    _
  $region27: #{quality_part_forward.1} parent=0 // pred_check_branch
    %1357 = sbr.rel (0) target = $region29
  $region28: #{quality_part_forward.1} parent=0 // pred_region
    _
  $region29: #{quality_part_forward.1} parent=0 // pred_fallthru
    _

</llo_original>
